<compile_context>
chip_gen: v6e
topology: v6e:2x2x1
jax: 0.10.0
libtpu: 0.0.40
codegen_flags: <defaults>
</compile_context>

<pallas_src>
import functools

import jax
import jax.numpy as jnp
from jax.experimental import pallas as pl
from jax.experimental.pallas import tpu as pltpu


def _round_up(x: int, m: int) -> int:
    return ((x + m - 1) // m) * m


def _pow_const(x, g: float):
    """x ** g for a compile-time constant g.

    Small non-negative integer exponents are lowered to repeated multiplication
    (pure VALU) instead of jnp.power (which is exp(g*log(x)) = 2 EUP transcendentals
    per element). Falls back to jnp.power for fractional exponents.
    """
    g = float(g)
    if g == 0.0:
        return jnp.ones_like(x)
    if g.is_integer() and 0.0 < g <= 16.0:
        e = int(g)
        out = None
        base = x
        while e > 0:
            if e & 1:
                out = base if out is None else out * base
            e >>= 1
            if e:
                base = base * base
        return out
    return jnp.power(x, g)


def _vmem_limit_bytes() -> int:
    """Generation-aware scoped-VMEM limit: ~3/4 of physical per-core VMEM.

    v7x has 64 MiB per TensorCore (-> ~48 MiB scoped), v5e/v6e have 128 MiB (-> 96 MiB).
    Falls back to the smallest (v7x) assumption if the hardware query is unavailable.
    """
    cap = 64 * 1024 * 1024
    try:
        info = pltpu.get_tpu_info()
        cap = int(getattr(info, "vmem_capacity_bytes", cap)) or cap
    except Exception:
        pass
    return int(max(32 * 1024 * 1024, min(cap * 3 // 4, 96 * 1024 * 1024)))


def _pick_tile_n(n: int, c: int, itemsize: int, vmem_limit: int) -> int:
    """Largest row tile whose working set fits comfortably inside the scoped VMEM.

    Per-row bytes ~= C * (2*itemsize for the double-buffered native-dtype input tile
    + ~4 materialized f32 tile temporaries). Half the scoped limit is used as the
    budget to leave headroom for the target tiles, scratch and codegen slack.
    """
    bytes_per_row = c * (2 * itemsize + 4 * 4)
    budget_rows = max(8, (int(vmem_limit * 0.5) // bytes_per_row) // 8 * 8)
    return int(min(_round_up(n, 8), budget_rows))


def _asl_kernel(logits_ref, target_ref, out_ref, acc_ref, *,
                coeff_pos: float, coeff_neg: float,
                gamma_pos: float, gamma_neg: float,
                n_total: int, tile_n: int, tiles_per_split: int,
                mask_start_tile):
    s_idx = pl.program_id(0)                     # batch split (megacore-parallel axis)
    i = pl.program_id(1)                         # sequential tile index within split
    g = s_idx * tiles_per_split + i              # global tile index

    @pl.when(i == 0)
    def _():
        acc_ref[...] = jnp.zeros_like(acc_ref)

    x = logits_ref[...].astype(jnp.float32)      # (tile_n, C)
    t = target_ref[...]                          # (tile_n, 1) int32
    tn, c = x.shape

    # Numerically stable log-softmax over the class (lane) axis.
    m = jnp.max(x, axis=-1, keepdims=True)
    z = x - m
    e = jnp.exp(z)                               # the only per-element transcendental
    s = jnp.sum(e, axis=-1, keepdims=True)
    inv_s = pl.reciprocal(s, approx=False)       # per-row: divide off the per-element path
    p = e * inv_s                                # softmax probs (reuse e; no 2nd exp)
    log_preds = z - jnp.log(s)

    # One-hot membership via iota comparison (torch scatter_ equivalent).
    class_ids = jax.lax.broadcasted_iota(jnp.int32, (tn, c), 1)
    is_target = class_ids == t

    # Fused signed coefficient = -(label-smoothed target) * asymmetric focusing weight:
    #   target column:  -((1-eps)+eps/C) * (1-p)^gamma_pos
    #   elsewhere:      -(eps/C)         * p^gamma_neg
    coeff = jnp.where(is_target,
                      coeff_pos * _pow_const(1.0 - p, gamma_pos),
                      coeff_neg * _pow_const(p, gamma_neg))
    loss = log_preds * coeff                     # (tile_n, C)

    if mask_start_tile is None:
        # Every tile is full: no row masking anywhere.
        acc_ref[...] = acc_ref[...] + jnp.sum(loss)
    else:
        @pl.when(g < mask_start_tile)
        def _():
            acc_ref[...] = acc_ref[...] + jnp.sum(loss)

        @pl.when(g >= mask_start_tile)
        def _():
            # Partial / padding tile: drop rows >= N with a true select (garbage rows
            # may contain NaN/Inf; arithmetic masking would leak them).
            row_ids = g * tile_n + jax.lax.broadcasted_iota(jnp.int32, (tn, 1), 0)
            valid = row_ids < n_total
            acc_ref[...] = acc_ref[...] + jnp.sum(jnp.where(valid, loss, 0.0))

    @pl.when(i == tiles_per_split - 1)
    def _():
        # Lane-dense (8,128) unmasked store of this split's partial sum.
        out_ref[...] = jnp.broadcast_to(acc_ref[...], out_ref.shape)


def asl_single_label(logits, target, *, gamma_pos=0.0, gamma_neg=4.0, eps=0.1,
                     reduction="mean", tile_n=None, vmem_limit_bytes=None):
    """logits: (N, C) float (any dtype); target: (N,) int class ids.

    Returns the scalar f32 ASL single-label loss (reduction 'mean' or 'sum').
    """
    n, c = logits.shape
    target_2d = target.astype(jnp.int32).reshape(n, 1)
    itemsize = jnp.dtype(logits.dtype).itemsize

    if vmem_limit_bytes is None:
        vmem_limit_bytes = _vmem_limit_bytes()
    if tile_n is None:
        tile_n = _pick_tile_n(n, c, itemsize, int(vmem_limit_bytes))

    n_tiles = pl.cdiv(n, tile_n)
    num_splits = 2 if n_tiles >= 2 else 1        # v7x: one split per TensorCore
    tiles_per_split = pl.cdiv(n_tiles, num_splits)
    padded_tiles = num_splits * tiles_per_split  # includes at most one padding tile
    full_tiles = n // tile_n                     # tiles with no out-of-range rows
    mask_start_tile = None if full_tiles >= padded_tiles else full_tiles
    last_tile = n_tiles - 1

    kernel = functools.partial(
        _asl_kernel,
        coeff_pos=-((1.0 - float(eps)) + float(eps) / c),
        coeff_neg=-(float(eps) / c),
        gamma_pos=float(gamma_pos), gamma_neg=float(gamma_neg),
        n_total=n, tile_n=tile_n, tiles_per_split=tiles_per_split,
        mask_start_tile=mask_start_tile)

    def _in_map(s, i):
        # Clamp: the (optional) padding tile of the last split re-reads the last real
        # tile; its rows are fully masked out inside the kernel.
        return (jnp.minimum(s * tiles_per_split + i, last_tile), 0)

    cost = pl.CostEstimate(
        flops=12 * n * c,
        transcendentals=n * c + 2 * n,
        bytes_accessed=n * c * itemsize + n * 4 + num_splits * 8 * 128 * 4)

    partials = pl.pallas_call(
        kernel,
        out_shape=jax.ShapeDtypeStruct((num_splits * 8, 128), jnp.float32),
        grid=(num_splits, tiles_per_split),
        in_specs=[
            pl.BlockSpec((tile_n, c), _in_map),       # logits tile (native dtype)
            pl.BlockSpec((tile_n, 1), _in_map),       # target tile
        ],
        out_specs=pl.BlockSpec((8, 128), lambda s, i: (s, 0)),
        scratch_shapes=[pltpu.VMEM((1, 1), jnp.float32)],  # per-split loss-sum accumulator
        compiler_params=pltpu.CompilerParams(
            dimension_semantics=("parallel", "arbitrary"),
            vmem_limit_bytes=int(vmem_limit_bytes)),
        cost_estimate=cost,
    )(logits, target_2d)

    total = jnp.sum(partials[::8, 0])            # one replicated partial per split
    if reduction == "mean":
        return total / n
    if reduction == "sum":
        return total
    # TODO(synk): reduction='none' (per-sample loss vector) would need a per-row output
    # layout; not implemented.
    raise ValueError(f"unsupported reduction: {reduction!r}")


def _reference(logits, target, gamma_pos=0.0, gamma_neg=4.0, eps=0.1):
    logits = logits.astype(jnp.float32)
    n, c = logits.shape
    log_preds = jax.nn.log_softmax(logits, axis=-1)
    targets = jax.nn.one_hot(target, c, dtype=jnp.float32)
    anti = 1.0 - targets
    xs_pos = jnp.exp(log_preds) * targets
    xs_neg = (1.0 - jnp.exp(log_preds)) * anti
    w = jnp.power(1.0 - xs_pos - xs_neg, gamma_pos * targets + gamma_neg * anti)
    log_preds = log_preds * w
    tc = targets * (1.0 - eps) + eps / c
    return jnp.mean(jnp.sum(-tc * log_preds, axis=-1))


if __name__ == "__main__":
    key = jax.random.PRNGKey(0)
    k1, k2, k3, k4, k5, k6 = jax.random.split(key, 6)

    # Small case matching the module's expected use: (batch, num_classes).
    N, C = 8, 32
    logits = jax.random.normal(k1, (N, C), dtype=jnp.float32)
    target = jax.random.randint(k2, (N,), 0, C, dtype=jnp.int32)
    loss = jax.block_until_ready(
        asl_single_label(logits, target, gamma_pos=0.0, gamma_neg=4.0, eps=0.1))
    ref = _reference(logits, target)
    assert jnp.allclose(loss, ref, atol=1e-5, rtol=1e-5), (loss, ref)

    # Multi-tile case with a forced small tile: exercises the 2-way batch split,
    # per-split accumulators, the clamped padding tile and the partial-row mask.
    N2, C2 = 20, 128
    logits2 = jax.random.normal(k3, (N2, C2), dtype=jnp.float32)
    target2 = jax.random.randint(k4, (N2,), 0, C2, dtype=jnp.int32)
    loss2 = jax.block_until_ready(
        asl_single_label(logits2, target2, gamma_pos=1.0, gamma_neg=4.0, eps=0.1,
                         tile_n=8))
    ref2 = _reference(logits2, target2, gamma_pos=1.0, gamma_neg=4.0, eps=0.1)
    assert jnp.allclose(loss2, ref2, atol=1e-5, rtol=1e-5), (loss2, ref2)

    # Native-bf16 logits with automatic (VMEM-derived) tile sizing; in-kernel f32 math.
    N3, C3 = 40, 96
    logits3 = jax.random.normal(k5, (N3, C3), dtype=jnp.bfloat16)
    target3 = jax.random.randint(k6, (N3,), 0, C3, dtype=jnp.int32)
    loss3 = jax.block_until_ready(
        asl_single_label(logits3, target3, gamma_pos=2.0, gamma_neg=4.0, eps=0.05))
    ref3 = _reference(logits3, target3, gamma_pos=2.0, gamma_neg=4.0, eps=0.05)
    assert jnp.allclose(loss3, ref3, atol=1e-4, rtol=1e-4), (loss3, ref3)

    print("KERNEL_OK")
</pallas_src>

<mosaic_0001>
module attributes {stable_mosaic.version = 11 : i64} {
  func.func @_asl_kernel(%arg0: i32, %arg1: i32, %arg2: memref<8x32xf32, #tpu.memory_space<vmem>>, %arg3: memref<8x1xi32, #tpu.memory_space<vmem>>, %arg4: memref<8x128xf32, #tpu.memory_space<vmem>>, %arg5: memref<1x1xf32, #tpu.memory_space<vmem>>) attributes {dimension_semantics = [#tpu.dimension_semantics<parallel>, #tpu.dimension_semantics<arbitrary>], iteration_bounds = array<i64: 1, 1>, scalar_prefetch = 0 : i64, scratch_operands = 1 : i64, tpu.core_type = #tpu.core_type<tc>, window_params = [{transform_indices = @transform_0, window_bounds = array<i64: 8, 32>}, {transform_indices = @transform_1, window_bounds = array<i64: 8, 1>}, {transform_indices = @transform_2, window_bounds = array<i64: 8, 128>}]} {
    %c0_i32 = arith.constant 0 : i32
    %0 = arith.cmpi eq, %arg1, %c0_i32 : i32
    %1 = arith.extui %0 : i1 to i32
    %c0_i32_0 = arith.constant 0 : i32
    %2 = arith.cmpi ne, %1, %c0_i32_0 : i32
    scf.if %2 {
      %cst_15 = arith.constant 0.000000e+00 : f32
      %41 = vector.broadcast %cst_15 : f32 to vector<1x1xf32>
      %c0_16 = arith.constant 0 : index
      %c0_17 = arith.constant 0 : index
      %42 = vector.load %arg5[%c0_16, %c0_17] : memref<1x1xf32, #tpu.memory_space<vmem>>, vector<1x1xf32>
      tpu.vector_store %arg5[%c0_16, %c0_17], %41 {strides = array<i32>} : memref<1x1xf32, #tpu.memory_space<vmem>>, vector<1x1xf32>,
    } else {
    }
    %c0 = arith.constant 0 : index
    %c0_1 = arith.constant 0 : index
    %3 = vector.load %arg2[%c0, %c0_1] : memref<8x32xf32, #tpu.memory_space<vmem>>, vector<8x32xf32>
    %c0_2 = arith.constant 0 : index
    %c0_3 = arith.constant 0 : index
    %4 = vector.load %arg3[%c0_2, %c0_3] : memref<8x1xi32, #tpu.memory_space<vmem>>, vector<8x1xi32>
    %cst = arith.constant dense<0xFF800000> : vector<8xf32>
    %5 = vector.multi_reduction <maximumf>, %3, %cst [1] : vector<8x32xf32> to vector<8xf32>
    %6 = vector.shape_cast %5 : vector<8xf32> to vector<8x1xf32>
    %7 = vector.broadcast %6 : vector<8x1xf32> to vector<8x32xf32>
    %8 = arith.subf %3, %7 : vector<8x32xf32>
    %9 = math.exp %8 : vector<8x32xf32>
    %cst_4 = arith.constant dense<0.000000e+00> : vector<8xf32>
    %10 = vector.multi_reduction <add>, %9, %cst_4 [1] : vector<8x32xf32> to vector<8xf32>
    %11 = vector.shape_cast %10 : vector<8xf32> to vector<8x1xf32>
    %12 = tpu.reciprocal %11 : vector<8x1xf32> -> vector<8x1xf32>
    %13 = vector.broadcast %12 : vector<8x1xf32> to vector<8x32xf32>
    %14 = arith.mulf %9, %13 : vector<8x32xf32>
    %15 = math.log %11 : vector<8x1xf32>
    %16 = vector.broadcast %15 : vector<8x1xf32> to vector<8x32xf32>
    %17 = arith.subf %8, %16 : vector<8x32xf32>
    %18 = tpu.iota {dimensions = array<i32: 1>} : vector<8x32xi32>
    %19 = vector.broadcast %4 : vector<8x1xi32> to vector<8x32xi32>
    %20 = arith.cmpi eq, %18, %19 : vector<8x32xi32>
    %cst_5 = arith.constant 1.000000e+00 : f32
    %21 = vector.broadcast %cst_5 : f32 to vector<8x32xf32>
    %cst_6 = arith.constant -0.903124988 : f32
    %22 = vector.broadcast %cst_6 : f32 to vector<8x32xf32>
    %23 = arith.mulf %22, %21 : vector<8x32xf32>
    %24 = arith.mulf %14, %14 : vector<8x32xf32>
    %25 = arith.mulf %24, %24 : vector<8x32xf32>
    %cst_7 = arith.constant -3.125000e-03 : f32
    %26 = vector.broadcast %cst_7 : f32 to vector<8x32xf32>
    %27 = arith.mulf %26, %25 : vector<8x32xf32>
    %28 = arith.select %20, %23, %27 : vector<8x32xi1>, vector<8x32xf32>
    %29 = arith.mulf %17, %28 : vector<8x32xf32>
    %c0_8 = arith.constant 0 : index
    %c0_9 = arith.constant 0 : index
    %30 = vector.load %arg5[%c0_8, %c0_9] : memref<1x1xf32, #tpu.memory_space<vmem>>, vector<1x1xf32>
    %31 = vector.shape_cast %29 : vector<8x32xf32> to vector<1x8x32xf32>
    %cst_10 = arith.constant dense<0.000000e+00> : vector<1xf32>
    %32 = vector.multi_reduction <add>, %31, %cst_10 [1, 2] : vector<1x8x32xf32> to vector<1xf32>
    %33 = vector.shape_cast %32 : vector<1xf32> to vector<1x1x1xf32>
    %34 = vector.extract %33[0, 0, 0] : f32 from vector<1x1x1xf32>
    %35 = vector.broadcast %34 : f32 to vector<1x1xf32>
    %36 = arith.addf %30, %35 : vector<1x1xf32>
    %c0_11 = arith.constant 0 : index
    %c0_12 = arith.constant 0 : index
    %37 = vector.load %arg5[%c0_11, %c0_12] : memref<1x1xf32, #tpu.memory_space<vmem>>, vector<1x1xf32>
    tpu.vector_store %arg5[%c0_11, %c0_12], %36 {strides = array<i32>} : memref<1x1xf32, #tpu.memory_space<vmem>>, vector<1x1xf32>,
    %c0_i32_13 = arith.constant 0 : i32
    %38 = arith.cmpi eq, %arg1, %c0_i32_13 : i32
    %39 = arith.extui %38 : i1 to i32
    %c0_i32_14 = arith.constant 0 : i32
    %40 = arith.cmpi ne, %39, %c0_i32_14 : i32
    scf.if %40 {
      %c0_15 = arith.constant 0 : index
      %c0_16 = arith.constant 0 : index
      %41 = vector.load %arg5[%c0_15, %c0_16] : memref<1x1xf32, #tpu.memory_space<vmem>>, vector<1x1xf32>
      %42 = vector.shape_cast %41 : vector<1x1xf32> to vector<1x1xf32>
      %43 = vector.broadcast %42 : vector<1x1xf32> to vector<8x128xf32>
      %c0_17 = arith.constant 0 : index
      %c0_18 = arith.constant 0 : index
      %44 = vector.load %arg4[%c0_17, %c0_18] : memref<8x128xf32, #tpu.memory_space<vmem>>, vector<8x128xf32>
      tpu.vector_store %arg4[%c0_17, %c0_18], %43 {strides = array<i32>} : memref<8x128xf32, #tpu.memory_space<vmem>>, vector<8x128xf32>,
    } else {
    }
    return
  }
  func.func @transform_0(%arg0: i32, %arg1: i32) -> (i32, i32) {
    %c1_i32 = arith.constant 1 : i32
    %0 = arith.muli %arg0, %c1_i32 : i32
    %1 = arith.addi %0, %arg1 : i32
    %c0_i32 = arith.constant 0 : i32
    %2 = arith.minsi %1, %c0_i32 : i32
    %c0_i32_0 = arith.constant 0 : i32
    %c0_i32_1 = arith.constant 0 : i32
    return %2, %c0_i32_0 : i32, i32
  }
  func.func @transform_1(%arg0: i32, %arg1: i32) -> (i32, i32) {
    %c1_i32 = arith.constant 1 : i32
    %0 = arith.muli %arg0, %c1_i32 : i32
    %1 = arith.addi %0, %arg1 : i32
    %c0_i32 = arith.constant 0 : i32
    %2 = arith.minsi %1, %c0_i32 : i32
    %c0_i32_0 = arith.constant 0 : i32
    %c0_i32_1 = arith.constant 0 : i32
    return %2, %c0_i32_0 : i32, i32
  }
  func.func @transform_2(%arg0: i32, %arg1: i32) -> (i32, i32) {
    %c0_i32 = arith.constant 0 : i32
    %c0_i32_0 = arith.constant 0 : i32
    return %arg0, %c0_i32 : i32, i32
  }
}

</mosaic_0001>

<llo_original>
// kernel: tpu_custom_call.1
$region0: #{tpu_custom_call.1}
  #allocation0 [shape = 'u32[]', space=smem, size = 0x4, offset = 0x4, fixed_abs, tag = 'smem constant byte address 0x4 - core index']
  #allocation1 [shape = 'u32[144,128]{1,0:T(1,128)}', space=vmem, size = 0x12000, scoped, tag = 'internal scratch']
  #allocation2 [shape = 'f32[1,1]{1,0:T(1,128)}', space=vmem, size = 0x200, scoped, tag = 'scratch operand']
  %s0 = inlined_call_operand.vmem [shape: f32[8,32], index: 0, kind: input, shape index: {}]
  %s1 = inlined_call_operand.vmem [shape: s32[8,1], index: 1, kind: input, shape index: {}]
  %s2 = inlined_call_operand.hbm [shape: f32[8,128], index: 2, kind: output, shape index: {}]
  %s3 = sld [smem:[#allocation0]]
  $region26: #{tpu_custom_call.1} parent=0
    _
  %s5 = ssub.s32 1, %s3
  %s6 = scalar_select 0, %s5, %s3
  $region1: #{tpu_custom_call.1} parent=0
    #allocation3 [shape = 'u8[4096]{0}', space=vmem, size = 0x1000, scoped, tag = 'output window, operand 0, single buffered']
    #allocation4 [shape = 's32[1]{0}', space=sflag, size = 0x4, scoped, tag = 'scoped memory for tpu_custom_call.1']
    %7 = vsyncpa [#allocation4], 0
    // Predicated region
    $region2: #{tpu_custom_call.1} parent=1 // pred_check
      _
    $region3: #{tpu_custom_call.1} parent=1 // pred_check_branch
      %9 = sbr.rel (0) target = $region5
    $region4: #{tpu_custom_call.1} parent=1 // pred_region
      %s10 = sadd.s32 0, 0
      %p11 = scmp.lt.s32.totalorder %s10, 0
      %s12 = scalar_select %p11, %s10, 0
      %p13 = scmp.lt.s32.totalorder %s12, 0
      %s14 = scalar_select %p13, %s12, 0
      %s15 = smul.addr %s14, 8
      %s16 = scalar_lea.vmem %s0, %s15
      %s17 = sadd.s32 0, 0
      %p18 = scmp.lt.s32.totalorder %s17, 0
      %s19 = scalar_select %p18, %s17, 0
    $region5: #{tpu_custom_call.1} parent=1 // pred_fallthru
      _
    // Predicated region
    $region6: #{tpu_custom_call.1} parent=1 // pred_check
      _
    $region7: #{tpu_custom_call.1} parent=1 // pred_check_branch
      %21 = sbr.rel (0) target = $region9
    $region8: #{tpu_custom_call.1} parent=1 // pred_region
      %s22 = sadd.s32 0, 0
      %p23 = scmp.lt.s32.totalorder %s22, 0
      %s24 = scalar_select %p23, %s22, 0
      %p25 = scmp.lt.s32.totalorder %s24, 0
      %s26 = scalar_select %p25, %s24, 0
      %s27 = smul.addr %s26, 8
      %s28 = scalar_lea.vmem %s1, %s27
      %s29 = sadd.s32 0, 0
      %p30 = scmp.lt.s32.totalorder %s29, 0
      %s31 = scalar_select %p30, %s29, 0
    $region9: #{tpu_custom_call.1} parent=1 // pred_fallthru
      _
    %s32 = sadd.s32 0, 0
    %p33 = scmp.lt.s32.totalorder %s32, 0
    %s34 = scalar_select %p33, %s32, 0
    %p35 = scmp.lt.s32.totalorder %s34, 0
    %s36 = scalar_select %p35, %s34, 0
    %s37 = smul.addr %s36, 8
    %s38 = scalar_lea.vmem %s0, %s37
    %s39 = sadd.s32 0, 0
    %p40 = scmp.lt.s32.totalorder %s39, 0
    %s41 = scalar_select %p40, %s39, 0
    %p42 = scmp.lt.s32.totalorder %s41, 0
    %s43 = scalar_select %p42, %s41, 0
    %s44 = smul.addr %s43, 8
    %s45 = scalar_lea.vmem %s1, %s44
    %s46 = sadd.s32 0, 0
    %p47 = scmp.lt.s32.totalorder %s46, 0
    %s48 = scalar_select %p47, %s46, 0
    %p49 = scmp.lt.s32.totalorder %s48, 0
    %s50 = scalar_select %p49, %s48, 0
    %s51 = smul.addr %s50, 8
    %s52 = scalar_lea.vmem %s0, %s51
    %s53 = sadd.s32 0, 0
    %p54 = scmp.lt.s32.totalorder %s53, 0
    %s55 = scalar_select %p54, %s53, 0
    %s56 = sadd.s32 0, 0
    %p57 = scmp.lt.s32.totalorder %s56, 0
    %s58 = scalar_select %p57, %s56, 0
    %p59 = scmp.lt.s32.totalorder %s58, 0
    %s60 = scalar_select %p59, %s58, 0
    %s61 = smul.addr %s60, 8
    %s62 = scalar_lea.vmem %s1, %s61
    %s63 = sadd.s32 0, 0
    %p64 = scmp.lt.s32.totalorder %s63, 0
    %s65 = scalar_select %p64, %s63, 0
    %p66 = scmp.eq.s32.totalorder 0, 0
    // Predicated region
    $region10: #{tpu_custom_call.1} parent=1 // pred_check
      %p67 = pneg %p66
    $region11: #{tpu_custom_call.1} parent=1 // pred_check_branch
      %69 = sbr.rel (%p67) target = $region13
    $region12: #{tpu_custom_call.1} parent=1 // pred_region
      %vm70 = vcmask 0
      %71 = vst.msk [vmem:[#allocation2] sm:$0x1] %vm70, 0.0
    $region13: #{tpu_custom_call.1} parent=1 // pred_fallthru
      _
    %v72 = vld [vmem:[%s52] sm:$0xff]
    %v73 = vld [vmem:[%s62] sm:$0xff]
    %vm74 = vcmask 261120
    %v75 = vsel %vm74, %v72, -inf
    %76 = vmax.xlane.f32.xlu0 %v75
    %v77 = vpop.xlane.xlu0 %76
    %v78 = vsub.f32 %v72, %v77
    %v79 = vmul.f32 %v78, 1.442695
    %v80 = vpow.pop %v79
    %v81 = vsel %vm74, %v80, 0.0
    %82 = vadd.xlane.f32.xlu0 %v81
    %v83 = vpop.xlane.xlu0 %82
    %v84 = vrcp.pop %v83
    %v85 = vmul.f32 %v80, %v84
    %v86 = vlog2.pop %v83
    %v87 = vmul.f32 %v86, 0.6931472
    %v88 = vsub.f32 %v78, %v87
    %v89 = vlaneseq
    %v90 = vand.u32 %v89, 127
    %91 = vset.pattern.permute.xlu0 0
    %92 = vperm.xlu0 %91, %v73
    %v93 = vpop.permute.xlu0 %92
    %vm94 = vcmp.eq.s32.totalorder %v90, %v93
    %v95 = vmul.f32 %v85, %v85
    %v96 = vmul.f32 %v95, %v95
    %v97 = vmul.f32 %v96, -0.003125
    %v98 = vsel %vm94, -0.903125, %v97
    %v99 = vmul.f32 %v88, %v98
    %v100 = vld [vmem:[#allocation2] sm:$0x1]
    %v101 = vsel %vm74, %v99, 0.0
    %102 = vadd.xlane.f32.xlu0 %v101
    %v103 = vpop.xlane.xlu0 %102
    %v104 = vrot.slane %v103, 4
    %v105 = vadd.f32 %v103, %v104
    %v106 = vrot.slane %v105, 2
    %v107 = vadd.f32 %v105, %v106
    %v108 = vrot.slane %v107, 1
    %v109 = vadd.f32 %v107, %v108
    %s110 = vtos %v109
    %v111 = vstv %s110
    %v112 = vadd.f32 %v100, %v111
    %vm113 = vcmask 0
    %114 = vst.msk [vmem:[#allocation2] sm:$0x1] %vm113, %v112
    // Predicated region
    $region14: #{tpu_custom_call.1} parent=1 // pred_check
      %p115 = pneg %p66
    $region15: #{tpu_custom_call.1} parent=1 // pred_check_branch
      %117 = sbr.rel (%p115) target = $region17
    $region16: #{tpu_custom_call.1} parent=1 // pred_region
      %v118 = vld [vmem:[#allocation2] sm:$0x1]
      %v120 = vlaneseq
      %v121 = vshrl.u32 %v120, 7
      %v122 = vsub.s32 0, %v121
      %v123 = vrot.slane %v118, %v122
      %124 = vset.pattern.permute.xlu0 0
      %125 = vperm.xlu0 %124, %v123
      %v126 = vpop.permute.xlu0 %125
      %128 = vst [vmem:[#allocation3] sm:$0xff] %v126
    $region17: #{tpu_custom_call.1} parent=1 // pred_fallthru
      _
    // Predicated region
    $region18: #{tpu_custom_call.1} parent=1 // pred_check
      _
    $region19: #{tpu_custom_call.1} parent=1 // pred_check_branch
      %130 = sbr.rel (0) target = $region21
    $region20: #{tpu_custom_call.1} parent=1 // pred_region
      %s132 = ssub.s32 128, 128
      %133 = vsyncadd [#allocation4], %s132
      %s135 = sshll.u32 [#allocation3], 4
      %s136 = int_to_ptr.vmem [resolvable:$true] %s135
      %138 = dma.vmem_to_hbm [thread:$0]  %s136, 128, %s2, [#allocation4]
    $region21: #{tpu_custom_call.1} parent=1 // pred_fallthru
      _
    // Predicated region
    $region22: #{tpu_custom_call.1} parent=1 // pred_check
      _
    $region23: #{tpu_custom_call.1} parent=1 // pred_check_branch
      %140 = sbr.rel (0) target = $region25
    $region24: #{tpu_custom_call.1} parent=1 // pred_region
      %141 = dma.done [#allocation4], 128
    $region25: #{tpu_custom_call.1} parent=1 // pred_fallthru
      _
    %142 = vsyncpa [#allocation4], 1

</llo_original>
